<compile_context>
chip_gen: v6e
topology: v6e:2x2x1
jax: 0.10.0
libtpu: 0.0.40
codegen_flags: <defaults>
</compile_context>

<pallas_src>
import functools

import jax
import jax.numpy as jnp
from jax.experimental import pallas as pl
from jax.experimental.pallas import tpu as pltpu


def _round_up(x, m):
    return ((x + m - 1) // m) * m


def _vmem_budget_bytes():
    """~85% of per-core VMEM (v5e/v6e: 128 MiB, v7x: 64 MiB); safe fallback."""
    cap = None
    try:
        info = pltpu.get_tpu_info()
        for name in ("vmem_capacity_bytes", "vmem_bytes", "vmem_size_bytes"):
            cap = getattr(info, name, None)
            if cap:
                break
    except Exception:
        cap = None
    if not cap:
        cap = 64 * 2**20  # conservative: fits every generation
    return int(0.85 * int(cap))


def _pick_tile(total, unit, max_tile):
    """Largest multiple of `unit` that divides `total` and is <= max_tile."""
    n = total // unit
    best = 1
    for d in range(1, n + 1):
        if n % d == 0 and d * unit <= max_tile:
            best = d
    return best * unit


def _choose_rows(m, block_rows):
    """Row tile / padded row count.  Keeps >= 2 row tiles when possible so the
    "parallel" row axis can be sharded across both v7x TensorCores."""
    tm = max(8, min(_round_up(block_rows, 8), _round_up(m, 8)))
    mpad = _round_up(m, tm)
    if mpad // tm < 2 and mpad >= 16:
        tm = _round_up((mpad + 1) // 2, 8)
        mpad = _round_up(m, tm)
    return tm, mpad


def _ffn_resident_kernel(x_ref, w1_ref, b1_ref, w2_ref, b2_ref, o_ref):
    # W1/W2/biases are VMEM-resident (constant index maps); x/out row tiles
    # stream over a 1-D row grid.  bf16 MXU matmuls, f32 bias/ReLU math.
    h = jnp.dot(x_ref[...], w1_ref[...], preferred_element_type=jnp.float32)
    h = jnp.maximum(h + b1_ref[...].astype(jnp.float32), 0.0)  # ReLU
    # TODO(synk): self.dropout1 is stochastic in training mode; this forward is
    # eval-mode (identity), matching inference semantics.
    out = jnp.dot(h.astype(w2_ref.dtype), w2_ref[...],
                  preferred_element_type=jnp.float32)
    o_ref[...] = (out + b2_ref[...].astype(jnp.float32)).astype(o_ref.dtype)


def _make_ffn_stream_kernel(use_scratch):
    # Streaming path: ff (reduction) axis is tiled and last in the grid; bias2
    # is folded into the accumulator init at k == 0.  For f32 outputs the
    # output block itself (resident across k) is the accumulator.
    def kernel(x_ref, w1_ref, b1_ref, w2_ref, b2_ref, o_ref, *scratch):
        acc_ref = scratch[0] if use_scratch else o_ref
        k = pl.program_id(1)

        @pl.when(k == 0)
        def _init():
            acc_ref[...] = jnp.broadcast_to(
                b2_ref[...].astype(acc_ref.dtype), acc_ref.shape)

        h = jnp.dot(x_ref[...], w1_ref[...], preferred_element_type=jnp.float32)
        h = jnp.maximum(h + b1_ref[...].astype(jnp.float32), 0.0)
        acc_ref[...] += jnp.dot(
            h.astype(w2_ref.dtype), w2_ref[...],
            preferred_element_type=jnp.float32).astype(acc_ref.dtype)

        if use_scratch:
            @pl.when(k == pl.num_programs(1) - 1)
            def _finalize():
                o_ref[...] = acc_ref[...].astype(o_ref.dtype)

    return kernel


def prepare_ffn_params(w1, b1, w2, b2, compute_dtype=jnp.bfloat16):
    """Pad + cast the FFN parameters once (hoisted out of the per-call path).

    w1: (d_model, ff_d) == linear1.weight.T     b1: (ff_d,)
    w2: (ff_d, d_model) == linear2.weight.T     b2: (d_model,)
    Weights are stored in the MXU compute dtype (bf16 by default); biases stay
    f32 so the bias/ReLU math runs in f32.
    """
    d_model, ff_d = w1.shape
    dpad = _round_up(d_model, 128)
    fpad = _round_up(ff_d, 128)
    w1_p = jnp.pad(w1, ((0, dpad - d_model), (0, fpad - ff_d))).astype(compute_dtype)
    w2_p = jnp.pad(w2, ((0, fpad - ff_d), (0, dpad - d_model))).astype(compute_dtype)
    b1_p = jnp.pad(b1, (0, fpad - ff_d)).reshape(1, fpad).astype(jnp.float32)
    b2_p = jnp.pad(b2, (0, dpad - d_model)).reshape(1, dpad).astype(jnp.float32)
    return dict(w1=w1_p, b1=b1_p, w2=w2_p, b2=b2_p, d_model=d_model, ff_d=ff_d)


@functools.partial(
    jax.jit,
    static_argnames=("d_model", "ff_d", "block_rows", "block_ff", "force_stream"))
def _ffn_forward(x, w1_p, b1_p, w2_p, b2_p, *, d_model, ff_d,
                 block_rows=512, block_ff=1024, force_stream=False):
    orig_shape = x.shape
    out_dtype = x.dtype
    compute_dtype = w1_p.dtype

    x2d = x.reshape(-1, d_model)
    m = x2d.shape[0]
    dpad, fpad = w1_p.shape

    cbytes = jnp.dtype(compute_dtype).itemsize
    obytes = jnp.dtype(out_dtype).itemsize
    use_scratch = jnp.dtype(out_dtype) != jnp.float32
    budget = _vmem_budget_bytes()

    # Explicit VMEM footprint models (double-buffered blocks + f32 temporaries)
    # used both to pick tiles and to set vmem_limit_bytes.
    def resident_fp(tm):
        return (2 * tm * dpad * (cbytes + obytes)      # x + out row blocks
                + 2 * 2 * dpad * fpad * cbytes         # W1 + W2 resident (headroom)
                + 2 * (fpad + dpad) * 4                # biases
                + 2 * tm * fpad * 4)                   # f32 intermediate h

    def stream_fp(tm, tf):
        scratch = tm * dpad * 4 if use_scratch else 0
        return (2 * tm * dpad * (cbytes + obytes)
                + 2 * 2 * dpad * tf * cbytes           # W1/W2 ff-slices (dbl-buf)
                + 2 * (tf + dpad) * 4                  # bias slices
                + scratch
                + 2 * tm * tf * 4)                     # f32 intermediate h

    # --- Path 1: whole W1/W2 resident in VMEM, 1-D row grid (no ff axis). ---
    tm_try = block_rows
    while True:
        tm_r, mpad_r = _choose_rows(m, tm_try)
        if resident_fp(tm_r) <= budget or tm_r <= 8:
            break
        tm_try = max(8, tm_r // 2)
    use_resident = (not force_stream) and resident_fp(tm_r) <= budget

    if use_resident:
        tm, mpad, tf = tm_r, mpad_r, fpad
    else:
        # --- Path 2: stream W1/W2 as ff-slices, accumulate over k. ---
        tf = _pick_tile(fpad, 128, max(128, block_ff))
        tm, mpad = _choose_rows(m, block_rows)
        while stream_fp(tm, tf) > budget:
            if tf > 128:
                tf = _pick_tile(fpad, 128, tf - 128)
            elif tm > 8:
                tm, mpad = _choose_rows(m, max(8, tm // 2))
            else:
                break

    # Pad x only when needed (weights were pre-padded once at setup time).
    pad_rows, pad_cols = mpad - m, dpad - d_model
    if pad_rows or pad_cols:
        x_p = jnp.pad(x2d, ((0, pad_rows), (0, pad_cols)))
    else:
        x_p = x2d
    x_p = x_p.astype(compute_dtype)

    footprint = resident_fp(tm) if use_resident else stream_fp(tm, tf)
    vmem_limit = int(min(budget, max(int(footprint * 1.25), 32 * 2**20)))

    if use_resident:
        out_p = pl.pallas_call(
            _ffn_resident_kernel,
            out_shape=jax.ShapeDtypeStruct((mpad, dpad), out_dtype),
            grid_spec=pltpu.PrefetchScalarGridSpec(
                num_scalar_prefetch=0,
                grid=(mpad // tm,),
                in_specs=[
                    pl.BlockSpec((tm, dpad), lambda i: (i, 0)),    # x row tile
                    pl.BlockSpec((dpad, fpad), lambda i: (0, 0)),  # W1 (resident)
                    pl.BlockSpec((1, fpad), lambda i: (0, 0)),     # b1 (resident)
                    pl.BlockSpec((fpad, dpad), lambda i: (0, 0)),  # W2 (resident)
                    pl.BlockSpec((1, dpad), lambda i: (0, 0)),     # b2 (resident)
                ],
                out_specs=pl.BlockSpec((tm, dpad), lambda i: (i, 0)),
            ),
            compiler_params=pltpu.CompilerParams(
                dimension_semantics=("parallel",),
                vmem_limit_bytes=vmem_limit,
            ),
        )(x_p, w1_p, b1_p, w2_p, b2_p)
    else:
        kernel = _make_ffn_stream_kernel(use_scratch)
        scratch_shapes = (
            [pltpu.VMEM((tm, dpad), jnp.float32)] if use_scratch else [])
        out_p = pl.pallas_call(
            kernel,
            out_shape=jax.ShapeDtypeStruct((mpad, dpad), out_dtype),
            grid_spec=pltpu.PrefetchScalarGridSpec(
                num_scalar_prefetch=0,
                grid=(mpad // tm, fpad // tf),
                in_specs=[
                    pl.BlockSpec((tm, dpad), lambda i, k: (i, 0)),  # x row tile
                    pl.BlockSpec((dpad, tf), lambda i, k: (0, k)),  # W1 ff-slice
                    pl.BlockSpec((1, tf), lambda i, k: (0, k)),     # b1 ff-slice
                    pl.BlockSpec((tf, dpad), lambda i, k: (k, 0)),  # W2 ff-slice
                    pl.BlockSpec((1, dpad), lambda i, k: (0, 0)),   # b2 (invariant)
                ],
                out_specs=pl.BlockSpec((tm, dpad), lambda i, k: (i, 0)),
                scratch_shapes=scratch_shapes,
            ),
            compiler_params=pltpu.CompilerParams(
                dimension_semantics=("parallel", "arbitrary"),
                vmem_limit_bytes=vmem_limit,
            ),
        )(x_p, w1_p, b1_p, w2_p, b2_p)

    if pad_rows or pad_cols:
        out_p = out_p[:m, :d_model]
    return out_p.reshape(orig_shape)


def ffn_pallas(x, params, *, block_rows=512, block_ff=1024, force_stream=False):
    """FFN forward: relu(x @ W1 + b1) @ W2 + b2 (dropout = identity / eval)."""
    return _ffn_forward(
        x, params["w1"], params["b1"], params["w2"], params["b2"],
        d_model=params["d_model"], ff_d=params["ff_d"],
        block_rows=block_rows, block_ff=block_ff, force_stream=force_stream)


def reference_ffn(x, w1, b1, w2, b2):
    h = jnp.maximum(x @ w1 + b1, 0.0)
    return h @ w2 + b2


if __name__ == "__main__":
    key = jax.random.PRNGKey(0)
    batch, seq, d_model, ff_d = 2, 8, 32, 64

    k_x, k_w1, k_b1, k_w2, k_b2 = jax.random.split(key, 5)

    x = jax.random.normal(k_x, (batch, seq, d_model), dtype=jnp.float32)

    # nn.Linear(d_model, ff_d).weight is (ff_d, d_model); we store the
    # transposed (d_model, ff_d) layout directly for the kernel's matmul.
    w1 = jax.random.normal(k_w1, (d_model, ff_d), dtype=jnp.float32) * 0.1
    b1 = jax.random.normal(k_b1, (ff_d,), dtype=jnp.float32) * 0.1
    w2 = jax.random.normal(k_w2, (ff_d, d_model), dtype=jnp.float32) * 0.1
    b2 = jax.random.normal(k_b2, (d_model,), dtype=jnp.float32) * 0.1

    params = prepare_ffn_params(w1, b1, w2, b2)  # pad/cast weights once

    ref = reference_ffn(x, w1, b1, w2, b2)

    # Resident-weight path (default for small/medium FFNs).
    out = jax.block_until_ready(ffn_pallas(x, params))
    assert out.shape == x.shape
    assert jnp.allclose(out, ref, atol=3e-2, rtol=3e-2), "resident path mismatch"

    # Also exercise the streaming (ff-tiled) fallback path.
    out_s = jax.block_until_ready(ffn_pallas(x, params, force_stream=True))
    assert jnp.allclose(out_s, ref, atol=3e-2, rtol=3e-2), "streaming path mismatch"

    print("KERNEL_OK")
</pallas_src>

<mosaic_0001>
module attributes {stable_mosaic.version = 11 : i64} {
  func.func @_ffn_resident_kernel(%arg0: i32, %arg1: memref<8x128xbf16, #tpu.memory_space<vmem>>, %arg2: memref<128x128xbf16, #tpu.memory_space<vmem>>, %arg3: memref<1x128xf32, #tpu.memory_space<vmem>>, %arg4: memref<128x128xbf16, #tpu.memory_space<vmem>>, %arg5: memref<1x128xf32, #tpu.memory_space<vmem>>, %arg6: memref<8x128xf32, #tpu.memory_space<vmem>>) attributes {dimension_semantics = [#tpu.dimension_semantics<parallel>], iteration_bounds = array<i64: 2>, scalar_prefetch = 0 : i64, scratch_operands = 0 : i64, tpu.core_type = #tpu.core_type<tc>, window_params = [{transform_indices = @transform_0, window_bounds = array<i64: 8, 128>}, {pipeline_mode = #tpu.pipeline_mode<synchronous>, transform_indices = @transform_1, window_bounds = array<i64: 128, 128>}, {pipeline_mode = #tpu.pipeline_mode<synchronous>, transform_indices = @transform_2, window_bounds = array<i64: 1, 128>}, {pipeline_mode = #tpu.pipeline_mode<synchronous>, transform_indices = @transform_3, window_bounds = array<i64: 128, 128>}, {pipeline_mode = #tpu.pipeline_mode<synchronous>, transform_indices = @transform_4, window_bounds = array<i64: 1, 128>}, {transform_indices = @transform_5, window_bounds = array<i64: 8, 128>}]} {
    %c0 = arith.constant 0 : index
    %c0_0 = arith.constant 0 : index
    %0 = vector.load %arg1[%c0, %c0_0] : memref<8x128xbf16, #tpu.memory_space<vmem>>, vector<8x128xbf16>
    %c0_1 = arith.constant 0 : index
    %c0_2 = arith.constant 0 : index
    %1 = vector.load %arg2[%c0_1, %c0_2] : memref<128x128xbf16, #tpu.memory_space<vmem>>, vector<128x128xbf16>
    %cst = arith.constant dense<0.000000e+00> : vector<8x128xf32>
    %2 = tpu.matmul %0, %1, %cst {dimension_numbers = #tpu.dot_dimension_numbers<[1], [0], [0], [1], [0, 0, 1, 1], [], []>} : vector<8x128xbf16>, vector<128x128xbf16>, vector<8x128xf32> -> vector<8x128xf32>
    %c0_3 = arith.constant 0 : index
    %c0_4 = arith.constant 0 : index
    %3 = vector.load %arg3[%c0_3, %c0_4] : memref<1x128xf32, #tpu.memory_space<vmem>>, vector<1x128xf32>
    %4 = vector.broadcast %3 : vector<1x128xf32> to vector<8x128xf32>
    %5 = arith.addf %2, %4 : vector<8x128xf32>
    %cst_5 = arith.constant 0.000000e+00 : f32
    %6 = vector.broadcast %cst_5 : f32 to vector<8x128xf32>
    %7 = arith.maximumf %5, %6 : vector<8x128xf32>
    %8 = arith.truncf %7 : vector<8x128xf32> to vector<8x128xbf16>
    %c0_6 = arith.constant 0 : index
    %c0_7 = arith.constant 0 : index
    %9 = vector.load %arg4[%c0_6, %c0_7] : memref<128x128xbf16, #tpu.memory_space<vmem>>, vector<128x128xbf16>
    %cst_8 = arith.constant dense<0.000000e+00> : vector<8x128xf32>
    %10 = tpu.matmul %8, %9, %cst_8 {dimension_numbers = #tpu.dot_dimension_numbers<[1], [0], [0], [1], [0, 0, 1, 1], [], []>} : vector<8x128xbf16>, vector<128x128xbf16>, vector<8x128xf32> -> vector<8x128xf32>
    %c0_9 = arith.constant 0 : index
    %c0_10 = arith.constant 0 : index
    %11 = vector.load %arg5[%c0_9, %c0_10] : memref<1x128xf32, #tpu.memory_space<vmem>>, vector<1x128xf32>
    %12 = vector.broadcast %11 : vector<1x128xf32> to vector<8x128xf32>
    %13 = arith.addf %10, %12 : vector<8x128xf32>
    %c0_11 = arith.constant 0 : index
    %c0_12 = arith.constant 0 : index
    %14 = vector.load %arg6[%c0_11, %c0_12] : memref<8x128xf32, #tpu.memory_space<vmem>>, vector<8x128xf32>
    tpu.vector_store %arg6[%c0_11, %c0_12], %13 {strides = array<i32>} : memref<8x128xf32, #tpu.memory_space<vmem>>, vector<8x128xf32>,
    return
  }
  func.func @transform_0(%arg0: i32) -> (i32, i32) {
    %c0_i32 = arith.constant 0 : i32
    %c0_i32_0 = arith.constant 0 : i32
    return %arg0, %c0_i32 : i32, i32
  }
  func.func @transform_1(%arg0: i32) -> (i32, i32) {
    %c0_i32 = arith.constant 0 : i32
    %c0_i32_0 = arith.constant 0 : i32
    %c0_i32_1 = arith.constant 0 : i32
    return %c0_i32, %c0_i32_0 : i32, i32
  }
  func.func @transform_2(%arg0: i32) -> (i32, i32) {
    %c0_i32 = arith.constant 0 : i32
    %c0_i32_0 = arith.constant 0 : i32
    %c0_i32_1 = arith.constant 0 : i32
    return %c0_i32, %c0_i32_0 : i32, i32
  }
  func.func @transform_3(%arg0: i32) -> (i32, i32) {
    %c0_i32 = arith.constant 0 : i32
    %c0_i32_0 = arith.constant 0 : i32
    %c0_i32_1 = arith.constant 0 : i32
    return %c0_i32, %c0_i32_0 : i32, i32
  }
  func.func @transform_4(%arg0: i32) -> (i32, i32) {
    %c0_i32 = arith.constant 0 : i32
    %c0_i32_0 = arith.constant 0 : i32
    %c0_i32_1 = arith.constant 0 : i32
    return %c0_i32, %c0_i32_0 : i32, i32
  }
  func.func @transform_5(%arg0: i32) -> (i32, i32) {
    %c0_i32 = arith.constant 0 : i32
    %c0_i32_0 = arith.constant 0 : i32
    return %arg0, %c0_i32 : i32, i32
  }
}

</mosaic_0001>

<llo_original>
// kernel: _ffn_forward.1
$region0: #{_ffn_forward.1}
  #allocation0 [shape = 'u32[]', space=smem, size = 0x4, offset = 0x4, fixed_abs, tag = 'smem constant byte address 0x4 - core index']
  #allocation1 [shape = 'u32[144,128]{1,0:T(1,128)}', space=vmem, size = 0x12000, scoped, tag = 'internal scratch']
  %s0 = inlined_call_operand.vmem [shape: bf16[16,128], index: 0, kind: input, shape index: {}]
  %s1 = inlined_call_operand.hbm [shape: bf16[128,128], index: 1, kind: input, shape index: {}]
  %s2 = inlined_call_operand.vmem [shape: f32[1,128], index: 2, kind: input, shape index: {}]
  %s3 = inlined_call_operand.hbm [shape: bf16[128,128], index: 3, kind: input, shape index: {}]
  %s4 = inlined_call_operand.vmem [shape: f32[1,128], index: 4, kind: input, shape index: {}]
  %s5 = inlined_call_operand.vmem [shape: f32[16,128], index: 5, kind: output, shape index: {}]
  %s6 = sld [smem:[#allocation0]]
  $region61: #{_ffn_forward.1} parent=0
    _
  %s8 = ssub.s32 1, %s6
  %s9 = scalar_select 0, %s8, %s6
  $region1: #{_ffn_forward.1} parent=0
    #allocation2 [shape = 'u8[32768]{0}', space=vmem, size = 0x8000, scoped, tag = 'input window, operand 1, single buffered']
    #allocation3 [shape = 's32[2]{0}', space=sflag, size = 0x8, scoped, tag = 'scoped memory for _ffn_forward.1']
    #allocation4 [shape = 'u8[32768]{0}', space=vmem, size = 0x8000, scoped, tag = 'input window, operand 3, single buffered']
    #allocation5 [shape = 's32[1]{0}', space=sflag, size = 0x4, scoped, tag = 'scoped memory for _ffn_forward.1']
    %10 = vsyncpa [#allocation3], 0
    %11 = vsyncpa [#allocation5], 0
    loop: start=0, step=1, limit=4
    $region2: #{_ffn_forward.1} parent=1 // loop_pre_header
      _
    $region3: #{_ffn_forward.1} parent=1 // loop_header
      %s13 = sphi 0, %s17
      %p14 = scmp.ge.s32.totalorder %s13, 4
      %s23 = sphi 0, %s25
      %s26 = sphi 0, %s23
      %s27 = sphi 0, %s26
      %s43 = sphi 0, %s27
      %s47 = sphi 0, %s47
      %s49 = sphi 0, %s47
      %s50 = sphi 0, %s49
      %s64 = sphi 0, %s50
      %s68 = sphi 0, %s68
      %s70 = sphi 0, %s68
      %s71 = sphi 0, %s70
      %s85 = sphi 0, %s71
      %s89 = sphi 0, %s89
      %s91 = sphi 0, %s89
      %s92 = sphi 0, %s91
      %s106 = sphi 0, %s92
      %s110 = sphi 0, %s110
      %s112 = sphi 0, %s110
      %s113 = sphi 0, %s112
      %s127 = sphi 0, %s113
      %s133 = sphi 0, %s135
      %s136 = sphi 0, %s133
      %s137 = sphi 0, %s136
      %s153 = sphi 0, %s137
    $region4: #{_ffn_forward.1} parent=1 // loop_header_branch
      %16 = sbr.rel (%p14) target = $region8
    $region5: #{_ffn_forward.1} parent=1 // loop_body
      %s18 = ssub.s32 %s13, 1
      %s19 = ssub.s32 %s13, 2
      %s20 = sadd.s32 %s13, 1
      %s21 = ssub.s32 %s13, %s20
      %p22 = scmp.eq.s32.totalorder %s21, 0
      %s24 = sadd.s32 %s23, 1
      %s25 = scalar_select %p22, %s23, %s24
      %p28 = pneg %p22
      %p29 = scmp.eq.s32.totalorder %s13, 1
      %p30 = por %p28, %p29
      %p31 = scmp.ne.s32.totalorder %s23, %s26
      %p32 = scmp.eq.s32.totalorder %s13, 0
      %p33 = por %p31, %p32
      %p34 = scmp.ne.s32.totalorder %s23, %s26
      %p35 = scmp.eq.s32.totalorder %s18, 1
      %p36 = por %p34, %p35
      %p37 = scmp.ne.s32.totalorder %s26, %s27
      %p38 = scmp.eq.s32.totalorder %s18, 0
      %p39 = por %p37, %p38
      %p40 = scmp.ne.s32.totalorder %s26, %s27
      %p41 = scmp.eq.s32.totalorder %s19, 1
      %p42 = por %p40, %p41
      %p44 = scmp.ne.s32.totalorder %s27, %s43
      %p45 = scmp.eq.s32.totalorder %s19, 0
      %p46 = por %p44, %p45
      %s48 = sadd.s32 %s47, 1
      %p51 = scmp.eq.s32.totalorder %s13, 1
      %p52 = scmp.ne.s32.totalorder %s47, %s49
      %p53 = scmp.eq.s32.totalorder %s13, 0
      %p54 = por %p52, %p53
      %p55 = scmp.ne.s32.totalorder %s47, %s49
      %p56 = scmp.eq.s32.totalorder %s18, 1
      %p57 = por %p55, %p56
      %p58 = scmp.ne.s32.totalorder %s49, %s50
      %p59 = scmp.eq.s32.totalorder %s18, 0
      %p60 = por %p58, %p59
      %p61 = scmp.ne.s32.totalorder %s49, %s50
      %p62 = scmp.eq.s32.totalorder %s19, 1
      %p63 = por %p61, %p62
      %p65 = scmp.ne.s32.totalorder %s50, %s64
      %p66 = scmp.eq.s32.totalorder %s19, 0
      %p67 = por %p65, %p66
      %s69 = sadd.s32 %s68, 1
      %p72 = scmp.eq.s32.totalorder %s13, 1
      %p73 = scmp.ne.s32.totalorder %s68, %s70
      %p74 = scmp.eq.s32.totalorder %s13, 0
      %p75 = por %p73, %p74
      %p76 = scmp.ne.s32.totalorder %s68, %s70
      %p77 = scmp.eq.s32.totalorder %s18, 1
      %p78 = por %p76, %p77
      %p79 = scmp.ne.s32.totalorder %s70, %s71
      %p80 = scmp.eq.s32.totalorder %s18, 0
      %p81 = por %p79, %p80
      %p82 = scmp.ne.s32.totalorder %s70, %s71
      %p83 = scmp.eq.s32.totalorder %s19, 1
      %p84 = por %p82, %p83
      %p86 = scmp.ne.s32.totalorder %s71, %s85
      %p87 = scmp.eq.s32.totalorder %s19, 0
      %p88 = por %p86, %p87
      %s90 = sadd.s32 %s89, 1
      %p93 = scmp.eq.s32.totalorder %s13, 1
      %p94 = scmp.ne.s32.totalorder %s89, %s91
      %p95 = scmp.eq.s32.totalorder %s13, 0
      %p96 = por %p94, %p95
      %p97 = scmp.ne.s32.totalorder %s89, %s91
      %p98 = scmp.eq.s32.totalorder %s18, 1
      %p99 = por %p97, %p98
      %p100 = scmp.ne.s32.totalorder %s91, %s92
      %p101 = scmp.eq.s32.totalorder %s18, 0
      %p102 = por %p100, %p101
      %p103 = scmp.ne.s32.totalorder %s91, %s92
      %p104 = scmp.eq.s32.totalorder %s19, 1
      %p105 = por %p103, %p104
      %p107 = scmp.ne.s32.totalorder %s92, %s106
      %p108 = scmp.eq.s32.totalorder %s19, 0
      %p109 = por %p107, %p108
      %s111 = sadd.s32 %s110, 1
      %p114 = scmp.eq.s32.totalorder %s13, 1
      %p115 = scmp.ne.s32.totalorder %s110, %s112
      %p116 = scmp.eq.s32.totalorder %s13, 0
      %p117 = por %p115, %p116
      %p118 = scmp.ne.s32.totalorder %s110, %s112
      %p119 = scmp.eq.s32.totalorder %s18, 1
      %p120 = por %p118, %p119
      %p121 = scmp.ne.s32.totalorder %s112, %s113
      %p122 = scmp.eq.s32.totalorder %s18, 0
      %p123 = por %p121, %p122
      %p124 = scmp.ne.s32.totalorder %s112, %s113
      %p125 = scmp.eq.s32.totalorder %s19, 1
      %p126 = por %p124, %p125
      %p128 = scmp.ne.s32.totalorder %s113, %s127
      %p129 = scmp.eq.s32.totalorder %s19, 0
      %p130 = por %p128, %p129
      %s131 = ssub.s32 %s13, %s20
      %p132 = scmp.eq.s32.totalorder %s131, 0
      %s134 = sadd.s32 %s133, 1
      %s135 = scalar_select %p132, %s133, %s134
      %p138 = pneg %p132
      %p139 = scmp.eq.s32.totalorder %s13, 1
      %p140 = por %p138, %p139
      %p141 = scmp.ne.s32.totalorder %s133, %s136
      %p142 = scmp.eq.s32.totalorder %s13, 0
      %p143 = por %p141, %p142
      %p144 = scmp.ne.s32.totalorder %s133, %s136
      %p145 = scmp.eq.s32.totalorder %s18, 1
      %p146 = por %p144, %p145
      %p147 = scmp.ne.s32.totalorder %s136, %s137
      %p148 = scmp.eq.s32.totalorder %s18, 0
      %p149 = por %p147, %p148
      %p150 = scmp.ne.s32.totalorder %s136, %s137
      %p151 = scmp.eq.s32.totalorder %s19, 1
      %p152 = por %p150, %p151
      %p154 = scmp.ne.s32.totalorder %s137, %s153
      %p155 = scmp.eq.s32.totalorder %s19, 0
      %p156 = por %p154, %p155
      %p157 = scmp.le.s32.totalorder 1, %s13
      %p158 = scmp.lt.s32.totalorder %s13, 3
      %p159 = pnand %p157, %p158
      %p160 = pneg %p159
      // Predicated region
      $region9: #{_ffn_forward.1} parent=5 // pred_check
        _
      $region10: #{_ffn_forward.1} parent=5 // pred_check_branch
        %162 = sbr.rel (%p159) target = $region12
      $region11: #{_ffn_forward.1} parent=5 // pred_region
        %s163 = ssub.s32 %s13, 1
        // Predicated region
        $region13: #{_ffn_forward.1} parent=11 // pred_check
          %p164 = pneg %p60
        $region14: #{_ffn_forward.1} parent=11 // pred_check_branch
          %166 = sbr.rel (%p164) target = $region16
        $region15: #{_ffn_forward.1} parent=11 // pred_region
          %s168 = ssub.s32 1024, 1024
          %169 = vsyncadd [#allocation3], %s168
          %s170 = sshll.u32 [#allocation2], 4
          %s171 = int_to_ptr.vmem [resolvable:$true] %s170
          %176 = dma.hbm_to_vmem [thread:$0]  %s1, 1024, %s171, [#allocation3], 64, 64, 4
        $region16: #{_ffn_forward.1} parent=11 // pred_fallthru
          _
        // Predicated region
        $region17: #{_ffn_forward.1} parent=11 // pred_check
          %p177 = pneg %p81
        $region18: #{_ffn_forward.1} parent=11 // pred_check_branch
          %179 = sbr.rel (%p177) target = $region20
        $region19: #{_ffn_forward.1} parent=11 // pred_region
          _
        $region20: #{_ffn_forward.1} parent=11 // pred_fallthru
          _
        // Predicated region
        $region21: #{_ffn_forward.1} parent=11 // pred_check
          %p180 = pneg %p102
        $region22: #{_ffn_forward.1} parent=11 // pred_check_branch
          %182 = sbr.rel (%p180) target = $region24
        $region23: #{_ffn_forward.1} parent=11 // pred_region
          %s184 = ssub.s32 1024, 1024
          %185 = vsyncadd [#allocation5], %s184
          %s186 = sshll.u32 [#allocation4], 4
          %s187 = int_to_ptr.vmem [resolvable:$true] %s186
          %192 = dma.hbm_to_vmem [thread:$0]  %s3, 1024, %s187, [#allocation5], 64, 64, 4
        $region24: #{_ffn_forward.1} parent=11 // pred_fallthru
          _
        // Predicated region
        $region25: #{_ffn_forward.1} parent=11 // pred_check
          %p193 = pneg %p123
        $region26: #{_ffn_forward.1} parent=11 // pred_check_branch
          %195 = sbr.rel (%p193) target = $region28
        $region27: #{_ffn_forward.1} parent=11 // pred_region
          _
        $region28: #{_ffn_forward.1} parent=11 // pred_fallthru
          _
      $region12: #{_ffn_forward.1} parent=5 // pred_fallthru
        _
      %p196 = scmp.lt.s32.totalorder %s13, 2
      // Predicated region
      $region29: #{_ffn_forward.1} parent=5 // pred_check
        %p197 = pneg %p196
      $region30: #{_ffn_forward.1} parent=5 // pred_check_branch
        %199 = sbr.rel (%p197) target = $region32
      $region31: #{_ffn_forward.1} parent=5 // pred_region
        // Predicated region
        $region33: #{_ffn_forward.1} parent=31 // pred_check
          %p200 = pneg %p33
        $region34: #{_ffn_forward.1} parent=31 // pred_check_branch
          %202 = sbr.rel (%p200) target = $region36
        $region35: #{_ffn_forward.1} parent=31 // pred_region
          %p203 = scmp.lt.s32.totalorder %s13, 1
          %s204 = scalar_select %p203, %s13, 1
          %s205 = smul.addr %s204, 4
          %s206 = scalar_lea.vmem %s0, %s205
        $region36: #{_ffn_forward.1} parent=31 // pred_fallthru
          _
      $region32: #{_ffn_forward.1} parent=5 // pred_fallthru
        _
      %p207 = scmp.le.s32.totalorder 1, %s13
      %p208 = scmp.lt.s32.totalorder %s13, 3
      %p209 = pnand %p207, %p208
      %p210 = pneg %p209
      // Predicated region
      $region37: #{_ffn_forward.1} parent=5 // pred_check
        _
      $region38: #{_ffn_forward.1} parent=5 // pred_check_branch
        %212 = sbr.rel (%p209) target = $region40
      $region39: #{_ffn_forward.1} parent=5 // pred_region
        %s213 = ssub.s32 %s13, 1
        // Predicated region
        $region41: #{_ffn_forward.1} parent=39 // pred_check
          %p214 = pneg %p60
        $region42: #{_ffn_forward.1} parent=39 // pred_check_branch
          %216 = sbr.rel (%p214) target = $region44
        $region43: #{_ffn_forward.1} parent=39 // pred_region
          %217 = dma.done [#allocation3], 1024
        $region44: #{_ffn_forward.1} parent=39 // pred_fallthru
          _
        // Predicated region
        $region45: #{_ffn_forward.1} parent=39 // pred_check
          %p218 = pneg %p102
        $region46: #{_ffn_forward.1} parent=39 // pred_check_branch
          %220 = sbr.rel (%p218) target = $region48
        $region47: #{_ffn_forward.1} parent=39 // pred_region
          %221 = dma.done [#allocation5], 1024
        $region48: #{_ffn_forward.1} parent=39 // pred_fallthru
          _
        %p222 = scmp.lt.s32.totalorder %s18, 1
        %s223 = scalar_select %p222, %s18, 1
        %s224 = smul.addr %s223, 4
        %s225 = scalar_lea.vmem %s0, %s224
        %p226 = pneg %p39
        %p227 = pneg %p36
        %p228 = pneg %p60
        %p229 = pneg %p57
        %p230 = pneg %p81
        %p231 = pneg %p78
        %p232 = pneg %p102
        %p233 = pneg %p99
        %p234 = pneg %p123
        %p235 = pneg %p120
        %p236 = pneg %p149
        %p237 = pneg %p146
        %p238 = scmp.lt.s32.totalorder %s18, 1
        %s239 = scalar_select %p238, %s18, 1
        %s240 = smul.addr %s239, 8
        %s241 = scalar_lea.vmem %s5, %s240
        %p242 = scmp.lt.s32.totalorder %s18, 1
        %s243 = scalar_select %p242, %s18, 1
        %s244 = smul.addr %s243, 4
        %s245 = scalar_lea.vmem %s0, %s244
        %p246 = scmp.lt.s32.totalorder %s18, 1
        %s247 = scalar_select %p246, %s18, 1
        %s248 = smul.addr %s247, 8
        %s249 = scalar_lea.vmem %s5, %s248
        %v251 = vld [vmem:[%s245] sm:$0xf]
        %v252 = vld [vmem:[#allocation2] sm:$0xf]
        %v253 = vld [vmem:[#allocation2 + $0x4] sm:$0xf]
        %v254 = vld [vmem:[#allocation2 + $0x8] sm:$0xf]
        %v255 = vld [vmem:[#allocation2 + $0xc] sm:$0xf]
        %v256 = vld [vmem:[#allocation2 + $0x10] sm:$0xf]
        %v257 = vld [vmem:[#allocation2 + $0x14] sm:$0xf]
        %v258 = vld [vmem:[#allocation2 + $0x18] sm:$0xf]
        %v259 = vld [vmem:[#allocation2 + $0x1c] sm:$0xf]
        %v260 = vld [vmem:[#allocation2 + $0x20] sm:$0xf]
        %v261 = vld [vmem:[#allocation2 + $0x24] sm:$0xf]
        %v262 = vld [vmem:[#allocation2 + $0x28] sm:$0xf]
        %v263 = vld [vmem:[#allocation2 + $0x2c] sm:$0xf]
        %v264 = vld [vmem:[#allocation2 + $0x30] sm:$0xf]
        %v265 = vld [vmem:[#allocation2 + $0x34] sm:$0xf]
        %v266 = vld [vmem:[#allocation2 + $0x38] sm:$0xf]
        %v267 = vld [vmem:[#allocation2 + $0x3c] sm:$0xf]
        %v268 = vld [vmem:[%s2] sm:$0x1]
        %v270 = vlaneseq
        %v271 = vshrl.u32 %v270, 7
        %v272 = vsub.s32 0, %v271
        %v273 = vrot.slane %v268, %v272
        %v291 = vunpack.c.l.b16 %v252
        %v292 = vunpack.c.l.b16 %v253
        %v293 = vunpack.c.l.b16 %v254
        %v294 = vunpack.c.l.b16 %v255
        %v295 = vunpack.c.l.b16 %v256
        %v296 = vunpack.c.l.b16 %v257
        %v297 = vunpack.c.l.b16 %v258
        %v298 = vunpack.c.l.b16 %v259
        %v299 = vunpack.c.l.b16 %v260
        %v300 = vunpack.c.l.b16 %v261
        %v301 = vunpack.c.l.b16 %v262
        %v302 = vunpack.c.l.b16 %v263
        %v303 = vunpack.c.l.b16 %v264
        %v304 = vunpack.c.l.b16 %v265
        %v305 = vunpack.c.l.b16 %v266
        %v306 = vunpack.c.l.b16 %v267
        %v307 = vpack.c.b16 %v292, %v291
        %v308 = vpack.c.b16 %v294, %v293
        %v309 = vpack.c.b16 %v296, %v295
        %v310 = vpack.c.b16 %v298, %v297
        %v311 = vpack.c.b16 %v300, %v299
        %v312 = vpack.c.b16 %v302, %v301
        %v313 = vpack.c.b16 %v304, %v303
        %v314 = vpack.c.b16 %v306, %v305
        %323 = vmatprep.subr.bf16.mxu0 0
        %324 = vmatpush1.bf16.msra.mxu0 %v314
        %325 = vmatprep.subr.bf16.mxu0 0
        %326 = vmatpush1.bf16.msra.mxu0 %v313
        %327 = vmatprep.subr.bf16.mxu0 0
        %328 = vmatpush1.bf16.msra.mxu0 %v312
        %329 = vmatprep.subr.bf16.mxu0 0
        %330 = vmatpush1.bf16.msra.mxu0 %v311
        %331 = vmatprep.subr.bf16.mxu0 0
        %332 = vmatpush1.bf16.msra.mxu0 %v310
        %333 = vmatprep.subr.bf16.mxu0 0
        %334 = vmatpush1.bf16.msra.mxu0 %v309
        %335 = vmatprep.subr.bf16.mxu0 0
        %336 = vmatpush1.bf16.msra.mxu0 %v308
        %337 = vmatprep.subr.bf16.mxu0 0
        %338 = vmatpush1.bf16.msra.mxu0 %v307
        %339 = vmatprep.subr.bf16.mxu0 0
        %340 = vmatpush2.bf16.msra.mxu0 0
        %341 = vmatprep.subr.bf16.mxu0 0
        %342 = vmatpush2.bf16.msra.mxu0 0
        %343 = vmatprep.subr.bf16.mxu0 0
        %344 = vmatpush2.bf16.msra.mxu0 0
        %345 = vmatprep.subr.bf16.mxu0 0
        %346 = vmatpush2.bf16.msra.mxu0 0
        %347 = vmatprep.subr.bf16.mxu0 0
        %348 = vmatpush2.bf16.msra.mxu0 0
        %349 = vmatprep.subr.bf16.mxu0 0
        %350 = vmatpush2.bf16.msra.mxu0 0
        %351 = vmatprep.subr.bf16.mxu0 0
        %352 = vmatpush2.bf16.msra.mxu0 0
        %353 = vmatprep.subr.bf16.mxu0 0
        %354 = vmatpush2.bf16.msra.mxu0 0
        %355 = vmatprep.mubr.bf16.mxu0 0
        %356 = vmatmul.mubr.bf16.gmra.mxu0 %v251
        %v357 = vpop.f32.mrf.mxu0
        %v358 = vadd.f32 %v273, %v357
        %v359 = vpop.f32.mrf.mxu0
        %v360 = vpop.f32.mrf.mxu0
        %v361 = vpop.f32.mrf.mxu0
        %362 = vdwg.mxu0
        %v363 = vmax.f32 %v358, 0.0
        %v364 = vpack.c.bf16 %v363, %v363
        %v365 = vld [vmem:[#allocation4] sm:$0xf]
        %v366 = vld [vmem:[#allocation4 + $0x4] sm:$0xf]
        %v367 = vld [vmem:[#allocation4 + $0x8] sm:$0xf]
        %v368 = vld [vmem:[#allocation4 + $0xc] sm:$0xf]
        %v369 = vld [vmem:[#allocation4 + $0x10] sm:$0xf]
        %v370 = vld [vmem:[#allocation4 + $0x14] sm:$0xf]
        %v371 = vld [vmem:[#allocation4 + $0x18] sm:$0xf]
        %v372 = vld [vmem:[#allocation4 + $0x1c] sm:$0xf]
        %v373 = vld [vmem:[#allocation4 + $0x20] sm:$0xf]
        %v374 = vld [vmem:[#allocation4 + $0x24] sm:$0xf]
        %v375 = vld [vmem:[#allocation4 + $0x28] sm:$0xf]
        %v376 = vld [vmem:[#allocation4 + $0x2c] sm:$0xf]
        %v377 = vld [vmem:[#allocation4 + $0x30] sm:$0xf]
        %v378 = vld [vmem:[#allocation4 + $0x34] sm:$0xf]
        %v379 = vld [vmem:[#allocation4 + $0x38] sm:$0xf]
        %v380 = vld [vmem:[#allocation4 + $0x3c] sm:$0xf]
        %v381 = vld [vmem:[%s4] sm:$0x1]
        %v383 = vlaneseq
        %v384 = vshrl.u32 %v383, 7
        %v385 = vsub.s32 0, %v384
        %v386 = vrot.slane %v381, %v385
        %v404 = vunpack.c.l.b16 %v365
        %v405 = vunpack.c.l.b16 %v366
        %v406 = vunpack.c.l.b16 %v367
        %v407 = vunpack.c.l.b16 %v368
        %v408 = vunpack.c.l.b16 %v369
        %v409 = vunpack.c.l.b16 %v370
        %v410 = vunpack.c.l.b16 %v371
        %v411 = vunpack.c.l.b16 %v372
        %v412 = vunpack.c.l.b16 %v373
        %v413 = vunpack.c.l.b16 %v374
        %v414 = vunpack.c.l.b16 %v375
        %v415 = vunpack.c.l.b16 %v376
        %v416 = vunpack.c.l.b16 %v377
        %v417 = vunpack.c.l.b16 %v378
        %v418 = vunpack.c.l.b16 %v379
        %v419 = vunpack.c.l.b16 %v380
        %v420 = vpack.c.b16 %v405, %v404
        %v421 = vpack.c.b16 %v407, %v406
        %v422 = vpack.c.b16 %v409, %v408
        %v423 = vpack.c.b16 %v411, %v410
        %v424 = vpack.c.b16 %v413, %v412
        %v425 = vpack.c.b16 %v415, %v414
        %v426 = vpack.c.b16 %v417, %v416
        %v427 = vpack.c.b16 %v419, %v418
        %436 = vmatprep.subr.bf16.mxu0 0
        %437 = vmatpush1.bf16.msra.mxu0 %v427
        %438 = vmatprep.subr.bf16.mxu0 0
        %439 = vmatpush1.bf16.msra.mxu0 %v426
        %440 = vmatprep.subr.bf16.mxu0 0
        %441 = vmatpush1.bf16.msra.mxu0 %v425
        %442 = vmatprep.subr.bf16.mxu0 0
        %443 = vmatpush1.bf16.msra.mxu0 %v424
        %444 = vmatprep.subr.bf16.mxu0 0
        %445 = vmatpush1.bf16.msra.mxu0 %v423
        %446 = vmatprep.subr.bf16.mxu0 0
        %447 = vmatpush1.bf16.msra.mxu0 %v422
        %448 = vmatprep.subr.bf16.mxu0 0
        %449 = vmatpush1.bf16.msra.mxu0 %v421
        %450 = vmatprep.subr.bf16.mxu0 0
        %451 = vmatpush1.bf16.msra.mxu0 %v420
        %452 = vmatprep.subr.bf16.mxu0 0
        %453 = vmatpush2.bf16.msra.mxu0 0
        %454 = vmatprep.subr.bf16.mxu0 0
        %455 = vmatpush2.bf16.msra.mxu0 0
        %456 = vmatprep.subr.bf16.mxu0 0
        %457 = vmatpush2.bf16.msra.mxu0 0
        %458 = vmatprep.subr.bf16.mxu0 0
        %459 = vmatpush2.bf16.msra.mxu0 0
        %460 = vmatprep.subr.bf16.mxu0 0
        %461 = vmatpush2.bf16.msra.mxu0 0
        %462 = vmatprep.subr.bf16.mxu0 0
        %463 = vmatpush2.bf16.msra.mxu0 0
        %464 = vmatprep.subr.bf16.mxu0 0
        %465 = vmatpush2.bf16.msra.mxu0 0
        %466 = vmatprep.subr.bf16.mxu0 0
        %467 = vmatpush2.bf16.msra.mxu0 0
        %468 = vmatprep.mubr.bf16.mxu0 0
        %469 = vmatmul.mubr.bf16.gmra.mxu0 %v364
        %v470 = vpop.f32.mrf.mxu0
        %v471 = vadd.f32 %v386, %v470
        %v472 = vpop.f32.mrf.mxu0
        %v473 = vpop.f32.mrf.mxu0
        %v474 = vpop.f32.mrf.mxu0
        %475 = vdwg.mxu0
        %476 = vst [vmem:[%s249] sm:$0xff] %v471
        %p477 = scmp.lt.s32.totalorder %s18, 1
        %s478 = scalar_select %p477, %s18, 1
        %s479 = smul.addr %s478, 8
        %s480 = scalar_lea.vmem %s5, %s479
        // Predicated region
        $region49: #{_ffn_forward.1} parent=39 // pred_check
          %p481 = pneg %p146
        $region50: #{_ffn_forward.1} parent=39 // pred_check_branch
          %483 = sbr.rel (%p481) target = $region52
        $region51: #{_ffn_forward.1} parent=39 // pred_region
          _
        $region52: #{_ffn_forward.1} parent=39 // pred_fallthru
          _
      $region40: #{_ffn_forward.1} parent=5 // pred_fallthru
        _
      %p484 = scmp.le.s32.totalorder 2, %s13
      // Predicated region
      $region53: #{_ffn_forward.1} parent=5 // pred_check
        %p485 = pneg %p484
      $region54: #{_ffn_forward.1} parent=5 // pred_check_branch
        %487 = sbr.rel (%p485) target = $region56
      $region55: #{_ffn_forward.1} parent=5 // pred_region
        %s488 = ssub.s32 %s13, 2
        // Predicated region
        $region57: #{_ffn_forward.1} parent=55 // pred_check
          %p489 = pneg %p152
        $region58: #{_ffn_forward.1} parent=55 // pred_check_branch
          %491 = sbr.rel (%p489) target = $region60
        $region59: #{_ffn_forward.1} parent=55 // pred_region
          %p492 = scmp.lt.s32.totalorder %s19, 1
          %s493 = scalar_select %p492, %s19, 1
          %s494 = smul.addr %s493, 8
          %s495 = scalar_lea.vmem %s5, %s494
        $region60: #{_ffn_forward.1} parent=55 // pred_fallthru
          _
      $region56: #{_ffn_forward.1} parent=5 // pred_fallthru
        _
    $region6: #{_ffn_forward.1} parent=1 // loop_footer
      %s17 = sadd.s32 1, %s13
    $region7: #{_ffn_forward.1} parent=1 // loop_footer_branch
      %12 = sbr.rel target = $region3
    $region8: #{_ffn_forward.1} parent=1 // loop_exit
      _
    %496 = vsyncpa [#allocation3], 1
    %s497 = scalar_lea.sflag [#allocation3], 1
    %498 = vsyncpa %s497, 1
    %499 = vsyncpa [#allocation5], 1

</llo_original>
